<compile_context>
chip_gen: v7x
topology: tpu7x:2x2x1
jax: 0.10.0
libtpu: 0.0.40
codegen_flags: <defaults>
</compile_context>

<pallas_src>
import jax
import jax.numpy as jnp
from jax import lax
from jax.experimental import pallas as pl
from jax.experimental.pallas import tpu as pltpu


# ---------------------------------------------------------------------------
# Path selection / budgets
# ---------------------------------------------------------------------------

# Keep the table VMEM-resident only when the whole-table DMA is comparable in
# bytes to the gather itself (bytes-moved gate, NOT "does it fit in VMEM").
_RESIDENT_TABLE_BYTES_MAX = 2 * 1024 * 1024
# The resident kernel fully unrolls its row-copy loop; bound the unroll.
_RESIDENT_MAX_UNROLL = 32
# Rows gathered per grid step on the HBM path -> one full (8, 128) 32-bit tile
# per 128 lanes, single unmasked store per step.
_ROWS_PER_STEP = 8


def _vmem_limit_bytes():
    """~60% of this generation's VMEM (64 MiB/TC on v7x, 128 MiB on v5e/v6e)."""
    try:
        cap = int(pltpu.get_tpu_info().vmem_capacity_bytes)
    except Exception:
        cap = 64 * 1024 * 1024  # conservative fallback: v7x per-TensorCore VMEM
    return max(16 * 1024 * 1024, int(cap * 0.6))


# ---------------------------------------------------------------------------
# Kernel 1: tiny-table VMEM-resident gather (single invocation, no grid)
# ---------------------------------------------------------------------------

def _resident_gather_kernel(ids_ref, emb_ref, out_ref):
    """out[i, :] = emb[clip(ids[i]), :] with the whole table VMEM-resident.

    ids_ref : SMEM (B,) int32
    emb_ref : VMEM (V, D)
    out_ref : VMEM (B, D)
    """
    B = out_ref.shape[0]
    V = emb_ref.shape[0]
    # B is small and static (<= _RESIDENT_MAX_UNROLL) -> bounded unroll.
    for i in range(B):
        idx = jnp.clip(ids_ref[i], 0, V - 1)  # OOB ids clamp (nn.Embedding would raise)
        out_ref[pl.ds(i, 1), :] = emb_ref[pl.ds(idx, 1), :]


def _resident_forward(landmark_ids, embedding_table):
    B = landmark_ids.shape[0]
    V, D = embedding_table.shape
    return pl.pallas_call(
        _resident_gather_kernel,
        out_shape=jax.ShapeDtypeStruct((B, D), embedding_table.dtype),
        in_specs=[
            pl.BlockSpec(memory_space=pltpu.MemorySpace.SMEM),   # landmark ids
            pl.BlockSpec(memory_space=pltpu.MemorySpace.VMEM),   # embedding table
        ],
        out_specs=pl.BlockSpec(memory_space=pltpu.MemorySpace.VMEM),
        compiler_params=pltpu.CompilerParams(
            vmem_limit_bytes=_vmem_limit_bytes(),
        ),
    )(landmark_ids, embedding_table)


# ---------------------------------------------------------------------------
# Kernel 2: HBM row gather (manual DMA, R rows per grid step)
# ---------------------------------------------------------------------------

def _hbm_gather_kernel(ids_ref, table_hbm, out_ref, staging, sems):
    """One grid step gathers R table rows into an (R, Dw) staging tile.

    ids_ref   : SMEM (B_pad,) int32  scalar-prefetched landmark ids
    table_hbm : HBM  (V, Dw)         full table; never copied wholesale
    out_ref   : VMEM (R, Dw)         output block for this grid step
    staging   : VMEM (R, Dw)         DMA landing buffer (scratch)
    sems      : DMA semaphores (R,)  one per in-flight row copy
    """
    g = pl.program_id(0)
    R = staging.shape[0]
    V = table_hbm.shape[0]
    base = pl.multiple_of(g * R, R)

    # Issue all R row DMAs back-to-back so they are in flight together
    # (hides HBM latency); each is a small contiguous 32-bit-element row copy.
    copies = []
    for r in range(R):  # bounded unroll: R == 8
        idx = jnp.clip(ids_ref[base + r], 0, V - 1)  # OOB ids clamp
        cp = pltpu.make_async_copy(table_hbm.at[idx], staging.at[r], sems.at[r])
        cp.start()
        copies.append(cp)

    # Wait for all rows, then emit one lane-dense unmasked (R, Dw) store.
    for cp in copies:
        cp.wait()
    out_ref[...] = staging[...]


def _hbm_gather_rows(landmark_ids, table_words):
    """Gather rows of a 32-bit-element (V, Dw) table: out[i] = T[ids[i]]."""
    B = landmark_ids.shape[0]
    V, Dw = table_words.shape
    R = _ROWS_PER_STEP
    num_blocks = pl.cdiv(B, R)
    B_pad = num_blocks * R
    if B_pad != B:
        landmark_ids = jnp.pad(landmark_ids, (0, B_pad - B))  # pad ids with 0

    out = pl.pallas_call(
        _hbm_gather_kernel,
        out_shape=jax.ShapeDtypeStruct((B_pad, Dw), table_words.dtype),
        grid_spec=pltpu.PrefetchScalarGridSpec(
            num_scalar_prefetch=1,                              # ids -> SMEM
            grid=(num_blocks,),
            in_specs=[pl.BlockSpec(memory_space=pl.ANY)],       # table stays in HBM
            out_specs=pl.BlockSpec((R, Dw), lambda g, ids: (g, 0)),
            scratch_shapes=[
                pltpu.VMEM((R, Dw), table_words.dtype),
                pltpu.SemaphoreType.DMA((R,)),
            ],
        ),
        compiler_params=pltpu.CompilerParams(
            # Independent steps -> on v7x the batch splits over both TCs.
            dimension_semantics=("parallel",),
        ),
    )(landmark_ids, table_words)
    return out[:B] if B_pad != B else out


# ---------------------------------------------------------------------------
# Public forward (== SymbolicInstructionLandmarkonlyModule.forward)
# ---------------------------------------------------------------------------

def landmark_only_forward(landmark_ids, embedding_table):
    """out[b, :] = embedding_table[landmark_ids[b], :].

    theta_1 / theta_2 / r of each symbolic instruction are ignored, exactly as
    in the PyTorch module.  Out-of-range ids are clamped to [0, V-1].
    """
    B = landmark_ids.shape[0]
    V, D = embedding_table.shape
    if landmark_ids.dtype != jnp.int32:
        landmark_ids = landmark_ids.astype(jnp.int32)

    dtype = embedding_table.dtype
    itemsize = jnp.dtype(dtype).itemsize
    table_bytes = V * D * itemsize

    # Tiny f32 table + small batch: whole-table residency costs about as much
    # as the gather itself; otherwise gather straight from HBM (~B*D bytes).
    if (itemsize == 4 and table_bytes <= _RESIDENT_TABLE_BYTES_MAX
            and B <= _RESIDENT_MAX_UNROLL):
        return _resident_forward(landmark_ids, embedding_table)

    if itemsize == 4:
        return _hbm_gather_rows(landmark_ids, embedding_table)

    # Narrow dtypes: gather through a packed uint32 "word" view so every DMA /
    # staging tile uses plain 32-bit (8,128) layout.  (Callers hitting this
    # path repeatedly should keep the uint32 view; the bitcast is layout-
    # preserving in row-major order and the round trip is bit-exact.)
    ratio = 4 // itemsize
    if D % ratio != 0:
        # TODO(synk): pad D up to a multiple of `ratio` (and ideally 128 lanes).
        raise NotImplementedError(
            "embedding dim must pack to whole 32-bit words for the HBM path")
    table_words = lax.bitcast_convert_type(
        embedding_table.reshape(V, D // ratio, ratio), jnp.uint32)
    out_words = _hbm_gather_rows(landmark_ids, table_words)
    return lax.bitcast_convert_type(out_words, dtype).reshape(B, D)


def reference_forward(landmark_ids, embedding_table):
    # Pure-JAX reference: torch.cat of per-instruction embedding lookups.
    return embedding_table[landmark_ids]


if __name__ == "__main__":
    key = jax.random.PRNGKey(0)
    k_e1, k_i1, k_e2, k_i2, k_e3, k_i3, k_th = jax.random.split(key, 7)

    # --- Case 1: tiny table -> VMEM-resident path (module-scale shapes). ---
    V1, D1, B1 = 16, 128, 8
    table1 = jax.random.normal(k_e1, (V1, D1), dtype=jnp.float32)
    ids1 = jax.random.randint(k_i1, (B1,), 0, V1, dtype=jnp.int32)
    thetas_r = jax.random.normal(k_th, (B1, 3), dtype=jnp.float32)  # ignored by module
    out1 = jax.block_until_ready(landmark_only_forward(ids1, table1))
    assert out1.shape == (B1, D1), out1.shape
    assert jnp.array_equal(out1, reference_forward(ids1, table1)), "case 1 mismatch"

    # --- Case 2: larger f32 table -> HBM DMA-gather path (padded batch). ---
    V2, D2, B2 = 4096, 256, 20
    table2 = jax.random.normal(k_e2, (V2, D2), dtype=jnp.float32)
    ids2 = jax.random.randint(k_i2, (B2,), 0, V2, dtype=jnp.int32)
    out2 = jax.block_until_ready(landmark_only_forward(ids2, table2))
    assert out2.shape == (B2, D2), out2.shape
    assert jnp.array_equal(out2, reference_forward(ids2, table2)), "case 2 mismatch"

    # --- Case 3: bf16 table -> HBM path through the packed-uint32 view. ---
    V3, D3, B3 = 8192, 256, 33
    table3 = jax.random.normal(k_e3, (V3, D3), dtype=jnp.float32).astype(jnp.bfloat16)
    ids3 = jax.random.randint(k_i3, (B3,), 0, V3, dtype=jnp.int32)
    out3 = jax.block_until_ready(landmark_only_forward(ids3, table3))
    assert out3.shape == (B3, D3), out3.shape
    assert jnp.array_equal(out3, reference_forward(ids3, table3)), "case 3 mismatch"

    print("KERNEL_OK")
</pallas_src>

<mosaic_0001>
module attributes {stable_mosaic.version = 11 : i64} {
  func.func @_resident_gather_kernel(%arg0: memref<8xi32, #tpu.memory_space<smem>>, %arg1: memref<16x128xf32, #tpu.memory_space<vmem>>, %arg2: memref<8x128xf32, #tpu.memory_space<vmem>>) attributes {dimension_semantics = [], scalar_prefetch = 0 : i64, scratch_operands = 0 : i64, tpu.core_type = #tpu.core_type<tc>} {
    %c0 = arith.constant 0 : index
    %0 = memref.load %arg0[%c0] : memref<8xi32, #tpu.memory_space<smem>>
    %c0_i32 = arith.constant 0 : i32
    %c15_i32 = arith.constant 15 : i32
    %1 = arith.maxsi %c0_i32, %0 : i32
    %2 = arith.minsi %c15_i32, %1 : i32
    %3 = arith.index_cast %2 : i32 to index
    %c0_0 = arith.constant 0 : index
    %4 = vector.load %arg1[%3, %c0_0] : memref<16x128xf32, #tpu.memory_space<vmem>>, vector<1x128xf32>
    %c0_1 = arith.constant 0 : index
    %c0_2 = arith.constant 0 : index
    %5 = vector.load %arg2[%c0_1, %c0_2] : memref<8x128xf32, #tpu.memory_space<vmem>>, vector<1x128xf32>
    tpu.vector_store %arg2[%c0_1, %c0_2], %4 {strides = array<i32>} : memref<8x128xf32, #tpu.memory_space<vmem>>, vector<1x128xf32>,
    %c1 = arith.constant 1 : index
    %6 = memref.load %arg0[%c1] : memref<8xi32, #tpu.memory_space<smem>>
    %c0_i32_3 = arith.constant 0 : i32
    %c15_i32_4 = arith.constant 15 : i32
    %7 = arith.maxsi %c0_i32_3, %6 : i32
    %8 = arith.minsi %c15_i32_4, %7 : i32
    %9 = arith.index_cast %8 : i32 to index
    %c0_5 = arith.constant 0 : index
    %10 = vector.load %arg1[%9, %c0_5] : memref<16x128xf32, #tpu.memory_space<vmem>>, vector<1x128xf32>
    %c1_6 = arith.constant 1 : index
    %c0_7 = arith.constant 0 : index
    %11 = vector.load %arg2[%c1_6, %c0_7] : memref<8x128xf32, #tpu.memory_space<vmem>>, vector<1x128xf32>
    tpu.vector_store %arg2[%c1_6, %c0_7], %10 {strides = array<i32>} : memref<8x128xf32, #tpu.memory_space<vmem>>, vector<1x128xf32>,
    %c2 = arith.constant 2 : index
    %12 = memref.load %arg0[%c2] : memref<8xi32, #tpu.memory_space<smem>>
    %c0_i32_8 = arith.constant 0 : i32
    %c15_i32_9 = arith.constant 15 : i32
    %13 = arith.maxsi %c0_i32_8, %12 : i32
    %14 = arith.minsi %c15_i32_9, %13 : i32
    %15 = arith.index_cast %14 : i32 to index
    %c0_10 = arith.constant 0 : index
    %16 = vector.load %arg1[%15, %c0_10] : memref<16x128xf32, #tpu.memory_space<vmem>>, vector<1x128xf32>
    %c2_11 = arith.constant 2 : index
    %c0_12 = arith.constant 0 : index
    %17 = vector.load %arg2[%c2_11, %c0_12] : memref<8x128xf32, #tpu.memory_space<vmem>>, vector<1x128xf32>
    tpu.vector_store %arg2[%c2_11, %c0_12], %16 {strides = array<i32>} : memref<8x128xf32, #tpu.memory_space<vmem>>, vector<1x128xf32>,
    %c3 = arith.constant 3 : index
    %18 = memref.load %arg0[%c3] : memref<8xi32, #tpu.memory_space<smem>>
    %c0_i32_13 = arith.constant 0 : i32
    %c15_i32_14 = arith.constant 15 : i32
    %19 = arith.maxsi %c0_i32_13, %18 : i32
    %20 = arith.minsi %c15_i32_14, %19 : i32
    %21 = arith.index_cast %20 : i32 to index
    %c0_15 = arith.constant 0 : index
    %22 = vector.load %arg1[%21, %c0_15] : memref<16x128xf32, #tpu.memory_space<vmem>>, vector<1x128xf32>
    %c3_16 = arith.constant 3 : index
    %c0_17 = arith.constant 0 : index
    %23 = vector.load %arg2[%c3_16, %c0_17] : memref<8x128xf32, #tpu.memory_space<vmem>>, vector<1x128xf32>
    tpu.vector_store %arg2[%c3_16, %c0_17], %22 {strides = array<i32>} : memref<8x128xf32, #tpu.memory_space<vmem>>, vector<1x128xf32>,
    %c4 = arith.constant 4 : index
    %24 = memref.load %arg0[%c4] : memref<8xi32, #tpu.memory_space<smem>>
    %c0_i32_18 = arith.constant 0 : i32
    %c15_i32_19 = arith.constant 15 : i32
    %25 = arith.maxsi %c0_i32_18, %24 : i32
    %26 = arith.minsi %c15_i32_19, %25 : i32
    %27 = arith.index_cast %26 : i32 to index
    %c0_20 = arith.constant 0 : index
    %28 = vector.load %arg1[%27, %c0_20] : memref<16x128xf32, #tpu.memory_space<vmem>>, vector<1x128xf32>
    %c4_21 = arith.constant 4 : index
    %c0_22 = arith.constant 0 : index
    %29 = vector.load %arg2[%c4_21, %c0_22] : memref<8x128xf32, #tpu.memory_space<vmem>>, vector<1x128xf32>
    tpu.vector_store %arg2[%c4_21, %c0_22], %28 {strides = array<i32>} : memref<8x128xf32, #tpu.memory_space<vmem>>, vector<1x128xf32>,
    %c5 = arith.constant 5 : index
    %30 = memref.load %arg0[%c5] : memref<8xi32, #tpu.memory_space<smem>>
    %c0_i32_23 = arith.constant 0 : i32
    %c15_i32_24 = arith.constant 15 : i32
    %31 = arith.maxsi %c0_i32_23, %30 : i32
    %32 = arith.minsi %c15_i32_24, %31 : i32
    %33 = arith.index_cast %32 : i32 to index
    %c0_25 = arith.constant 0 : index
    %34 = vector.load %arg1[%33, %c0_25] : memref<16x128xf32, #tpu.memory_space<vmem>>, vector<1x128xf32>
    %c5_26 = arith.constant 5 : index
    %c0_27 = arith.constant 0 : index
    %35 = vector.load %arg2[%c5_26, %c0_27] : memref<8x128xf32, #tpu.memory_space<vmem>>, vector<1x128xf32>
    tpu.vector_store %arg2[%c5_26, %c0_27], %34 {strides = array<i32>} : memref<8x128xf32, #tpu.memory_space<vmem>>, vector<1x128xf32>,
    %c6 = arith.constant 6 : index
    %36 = memref.load %arg0[%c6] : memref<8xi32, #tpu.memory_space<smem>>
    %c0_i32_28 = arith.constant 0 : i32
    %c15_i32_29 = arith.constant 15 : i32
    %37 = arith.maxsi %c0_i32_28, %36 : i32
    %38 = arith.minsi %c15_i32_29, %37 : i32
    %39 = arith.index_cast %38 : i32 to index
    %c0_30 = arith.constant 0 : index
    %40 = vector.load %arg1[%39, %c0_30] : memref<16x128xf32, #tpu.memory_space<vmem>>, vector<1x128xf32>
    %c6_31 = arith.constant 6 : index
    %c0_32 = arith.constant 0 : index
    %41 = vector.load %arg2[%c6_31, %c0_32] : memref<8x128xf32, #tpu.memory_space<vmem>>, vector<1x128xf32>
    tpu.vector_store %arg2[%c6_31, %c0_32], %40 {strides = array<i32>} : memref<8x128xf32, #tpu.memory_space<vmem>>, vector<1x128xf32>,
    %c7 = arith.constant 7 : index
    %42 = memref.load %arg0[%c7] : memref<8xi32, #tpu.memory_space<smem>>
    %c0_i32_33 = arith.constant 0 : i32
    %c15_i32_34 = arith.constant 15 : i32
    %43 = arith.maxsi %c0_i32_33, %42 : i32
    %44 = arith.minsi %c15_i32_34, %43 : i32
    %45 = arith.index_cast %44 : i32 to index
    %c0_35 = arith.constant 0 : index
    %46 = vector.load %arg1[%45, %c0_35] : memref<16x128xf32, #tpu.memory_space<vmem>>, vector<1x128xf32>
    %c7_36 = arith.constant 7 : index
    %c0_37 = arith.constant 0 : index
    %47 = vector.load %arg2[%c7_36, %c0_37] : memref<8x128xf32, #tpu.memory_space<vmem>>, vector<1x128xf32>
    tpu.vector_store %arg2[%c7_36, %c0_37], %46 {strides = array<i32>} : memref<8x128xf32, #tpu.memory_space<vmem>>, vector<1x128xf32>,
    return
  }
}

</mosaic_0001>

<llo_original>
// kernel: tpu_custom_call.1
$region0: #{tpu_custom_call.1}
  #allocation0 [shape = 'u32[]', space=smem, size = 0x4, offset = 0x4, fixed_abs, tag = 'smem constant byte address 0x4 - core index']
  #allocation1 [shape = 'u32[144,128]{1,0:T(1,128)}', space=vmem, size = 0x12000, scoped, tag = 'internal scratch']
  %s0 = inlined_call_operand.hbm [shape: s32[8], index: 0, kind: input, shape index: {}]
  %s1 = inlined_call_operand.hbm [shape: f32[16,128], index: 1, kind: input, shape index: {}]
  %s2 = inlined_call_operand.hbm [shape: f32[8,128], index: 2, kind: output, shape index: {}]
  %s3 = sld [smem:[#allocation0]]
  $region26: #{tpu_custom_call.1} parent=0
    _
  %s5 = ssub.s32 1, %s3
  %s6 = scalar_select 0, %s5, %s3
  $region1: #{tpu_custom_call.1} parent=0
    #allocation2 [shape = 'u8[512]{0}', space=smem, size = 0x200, scoped, tag = 'input window, operand 0, single buffered']
    #allocation3 [shape = 's32[1]{0}', space=sflag, size = 0x4, scoped, tag = 'scoped memory for tpu_custom_call.1']
    #allocation4 [shape = 's32[1]{0}', space=sflag, size = 0x4, scoped, tag = 'scoped memory for tpu_custom_call.1']
    #allocation5 [shape = 's32[1]{0}', space=sflag, size = 0x4, scoped, tag = 'scoped memory for tpu_custom_call.1']
    #allocation6 [shape = 'u8[8192]{0}', space=vmem, size = 0x2000, scoped, tag = 'input window, operand 1, single buffered']
    #allocation7 [shape = 'u8[4096]{0}', space=vmem, size = 0x1000, scoped, tag = 'output window, operand 0, single buffered']
    %7 = vsyncpa [#allocation5], 0
    %8 = vsyncpa [#allocation3], 0
    %9 = vsyncpa [#allocation4], 0
    // Predicated region
    $region2: #{tpu_custom_call.1} parent=1 // pred_check
      _
    $region3: #{tpu_custom_call.1} parent=1 // pred_check_branch
      %11 = sbr.rel (0) target = $region5
    $region4: #{tpu_custom_call.1} parent=1 // pred_region
      %s13 = ssub.s32 16, 16
      %14 = vsyncadd [#allocation5], %s13
      %17 = dma.hbm_to_smem %s0, 16, [#allocation2], [#allocation5]
    $region5: #{tpu_custom_call.1} parent=1 // pred_fallthru
      _
    // Predicated region
    $region6: #{tpu_custom_call.1} parent=1 // pred_check
      _
    $region7: #{tpu_custom_call.1} parent=1 // pred_check_branch
      %19 = sbr.rel (0) target = $region9
    $region8: #{tpu_custom_call.1} parent=1 // pred_region
      %s21 = ssub.s32 256, 256
      %22 = vsyncadd [#allocation3], %s21
      %s23 = sshll.u32 [#allocation6], 4
      %s24 = int_to_ptr.vmem [resolvable:$true] %s23
      %29 = dma.hbm_to_vmem [thread:$0]  %s1, 256, %s24, [#allocation3], 128, 128, 8
    $region9: #{tpu_custom_call.1} parent=1 // pred_fallthru
      _
    // Predicated region
    $region10: #{tpu_custom_call.1} parent=1 // pred_check
      _
    $region11: #{tpu_custom_call.1} parent=1 // pred_check_branch
      %31 = sbr.rel (0) target = $region13
    $region12: #{tpu_custom_call.1} parent=1 // pred_region
      %32 = dma.done [#allocation5], 16
    $region13: #{tpu_custom_call.1} parent=1 // pred_fallthru
      _
    // Predicated region
    $region14: #{tpu_custom_call.1} parent=1 // pred_check
      _
    $region15: #{tpu_custom_call.1} parent=1 // pred_check_branch
      %34 = sbr.rel (0) target = $region17
    $region16: #{tpu_custom_call.1} parent=1 // pred_region
      %35 = dma.done [#allocation3], 256
    $region17: #{tpu_custom_call.1} parent=1 // pred_fallthru
      _
    %36 = sfence
    %s37 = sld [smem:[#allocation2]]
    %p38 = scmp.gt.s32.totalorder %s37, 0
    %s39 = scalar_select %p38, %s37, 0
    %p40 = scmp.lt.s32.totalorder %s39, 15
    %s41 = scalar_select %p40, %s39, 15
    %s42 = scalar_lea.vmem [#allocation6], %s41
    %v43 = vld [vmem:[%s42] sm:$0x1]
    %44 = vst [vmem:[#allocation7] sm:$0x1] %v43
    %s45 = sld [smem:[#allocation2 + $0x1]]
    %p46 = scmp.gt.s32.totalorder %s45, 0
    %s47 = scalar_select %p46, %s45, 0
    %p48 = scmp.lt.s32.totalorder %s47, 15
    %s49 = scalar_select %p48, %s47, 15
    %s50 = scalar_lea.vmem [#allocation6], %s49
    %v51 = vld [vmem:[%s50] sm:$0x1]
    %52 = vst [vmem:[#allocation7 + $0x1] sm:$0x1] %v51
    %s53 = sld [smem:[#allocation2 + $0x2]]
    %p54 = scmp.gt.s32.totalorder %s53, 0
    %s55 = scalar_select %p54, %s53, 0
    %p56 = scmp.lt.s32.totalorder %s55, 15
    %s57 = scalar_select %p56, %s55, 15
    %s58 = scalar_lea.vmem [#allocation6], %s57
    %v59 = vld [vmem:[%s58] sm:$0x1]
    %60 = vst [vmem:[#allocation7 + $0x2] sm:$0x1] %v59
    %s61 = sld [smem:[#allocation2 + $0x3]]
    %p62 = scmp.gt.s32.totalorder %s61, 0
    %s63 = scalar_select %p62, %s61, 0
    %p64 = scmp.lt.s32.totalorder %s63, 15
    %s65 = scalar_select %p64, %s63, 15
    %s66 = scalar_lea.vmem [#allocation6], %s65
    %v67 = vld [vmem:[%s66] sm:$0x1]
    %68 = vst [vmem:[#allocation7 + $0x3] sm:$0x1] %v67
    %s69 = sld [smem:[#allocation2 + $0x4]]
    %p70 = scmp.gt.s32.totalorder %s69, 0
    %s71 = scalar_select %p70, %s69, 0
    %p72 = scmp.lt.s32.totalorder %s71, 15
    %s73 = scalar_select %p72, %s71, 15
    %s74 = scalar_lea.vmem [#allocation6], %s73
    %v75 = vld [vmem:[%s74] sm:$0x1]
    %76 = vst [vmem:[#allocation7 + $0x4] sm:$0x1] %v75
    %s77 = sld [smem:[#allocation2 + $0x5]]
    %p78 = scmp.gt.s32.totalorder %s77, 0
    %s79 = scalar_select %p78, %s77, 0
    %p80 = scmp.lt.s32.totalorder %s79, 15
    %s81 = scalar_select %p80, %s79, 15
    %s82 = scalar_lea.vmem [#allocation6], %s81
    %v83 = vld [vmem:[%s82] sm:$0x1]
    %84 = vst [vmem:[#allocation7 + $0x5] sm:$0x1] %v83
    %s85 = sld [smem:[#allocation2 + $0x6]]
    %p86 = scmp.gt.s32.totalorder %s85, 0
    %s87 = scalar_select %p86, %s85, 0
    %p88 = scmp.lt.s32.totalorder %s87, 15
    %s89 = scalar_select %p88, %s87, 15
    %s90 = scalar_lea.vmem [#allocation6], %s89
    %v91 = vld [vmem:[%s90] sm:$0x1]
    %92 = vst [vmem:[#allocation7 + $0x6] sm:$0x1] %v91
    %s93 = sld [smem:[#allocation2 + $0x7]]
    %p94 = scmp.gt.s32.totalorder %s93, 0
    %s95 = scalar_select %p94, %s93, 0
    %p96 = scmp.lt.s32.totalorder %s95, 15
    %s97 = scalar_select %p96, %s95, 15
    %s98 = scalar_lea.vmem [#allocation6], %s97
    %v99 = vld [vmem:[%s98] sm:$0x1]
    %100 = vst [vmem:[#allocation7 + $0x7] sm:$0x1] %v99
    // Predicated region
    $region18: #{tpu_custom_call.1} parent=1 // pred_check
      _
    $region19: #{tpu_custom_call.1} parent=1 // pred_check_branch
      %102 = sbr.rel (0) target = $region21
    $region20: #{tpu_custom_call.1} parent=1 // pred_region
      %s104 = ssub.s32 128, 128
      %105 = vsyncadd [#allocation4], %s104
      %s107 = sshll.u32 [#allocation7], 4
      %s108 = int_to_ptr.vmem [resolvable:$true] %s107
      %110 = dma.vmem_to_hbm [thread:$0]  %s108, 128, %s2, [#allocation4]
    $region21: #{tpu_custom_call.1} parent=1 // pred_fallthru
      _
    // Predicated region
    $region22: #{tpu_custom_call.1} parent=1 // pred_check
      _
    $region23: #{tpu_custom_call.1} parent=1 // pred_check_branch
      %112 = sbr.rel (0) target = $region25
    $region24: #{tpu_custom_call.1} parent=1 // pred_region
      %113 = dma.done [#allocation4], 128
    $region25: #{tpu_custom_call.1} parent=1 // pred_fallthru
      _
    %114 = vsyncpa [#allocation3], 1
    %115 = vsyncpa [#allocation4], 1
    %116 = vsyncpa [#allocation5], 1

</llo_original>
